<compile_context>
chip_gen: v5e
topology: v5e:2x2
jax: 0.10.0
libtpu: 0.0.40
codegen_flags: <defaults>
</compile_context>

<pallas_src>
import functools
import math

import jax
import jax.numpy as jnp
from jax.experimental import pallas as pl
from jax.experimental.pallas import tpu as pltpu


def _film_kernel(x_ref, c_ref, w_ref, b_ref, o_ref, *, F, ew_dtype):
    c = c_ref[...]                                                # (tile_m, C)
    # Single fused MXU call: y = c @ [Wg | Wb] + [bg | bb], f32 accumulation.
    y = jnp.dot(c, w_ref[...], preferred_element_type=jnp.float32) + b_ref[...]
    gamma = y[:, :F].astype(ew_dtype)
    beta = y[:, F:].astype(ew_dtype)
    x = x_ref[...].astype(ew_dtype)
    o_ref[...] = (gamma * x + beta).astype(o_ref.dtype)


def _round_up(v, m):
    return (v + m - 1) // m * m


def film(x, cond, wg, bg, wb, bb, *, tile_m=None):
    """FiLM forward.

    x:    (..., in_features)
    cond: (..., conditioning_features)  -- same leading dims as x
    wg/wb stored as (conditioning_features, in_features)  (PyTorch (out,in) transposed)
    bg/bb: (in_features,)
    """
    F = x.shape[-1]
    C = cond.shape[-1]
    lead = x.shape[:-1]
    assert cond.shape[:-1] == lead, "x and conditioning_input must share leading dims"

    M = math.prod(lead) if lead else 1
    x2 = x.reshape(M, F)
    c2 = cond.reshape(M, C)

    # Fused projection params (tiny; constant-folded under jit).
    w = jnp.concatenate([wg, wb], axis=1)                 # (C, 2F)
    b = jnp.concatenate([bg, bb]).reshape(1, 2 * F)       # (1, 2F)

    itemsize = jnp.dtype(x.dtype).itemsize
    sublane = max(8, 32 // max(1, itemsize))              # f32: 8, bf16: 16

    if tile_m is None:
        # ~2 MiB x-tile keeps the mem-bound pipeline near HBM roofline while
        # bounding VMEM (double-buffered tiles + f32 temporaries).
        target_tile_bytes = 2 * 1024 * 1024
        tile_m = target_tile_bytes // max(1, F * itemsize)
        tile_m = max(sublane, min(tile_m, 2048))
        tile_m = (tile_m // sublane) * sublane
        tile_m = min(tile_m, _round_up(M, sublane))
        # Give both v7x TensorCores work when M allows (harmless on 1-TC chips).
        if pl.cdiv(M, tile_m) < 2 and M > 2 * sublane:
            tile_m = _round_up(pl.cdiv(M, 2), sublane)
    grid = (pl.cdiv(M, tile_m),)

    # bf16 epilogue only where the VPU has native bf16 (v6e/v7x); f32 otherwise.
    try:
        is_v5 = "v5" in jax.devices()[0].device_kind.lower()
    except Exception:  # pragma: no cover - be conservative if query fails
        is_v5 = True
    ew_dtype = x.dtype if (x.dtype == jnp.bfloat16 and not is_v5) else jnp.float32
    ew_itemsize = jnp.dtype(ew_dtype).itemsize

    # Explicit VMEM budget: 2x-buffered x/cond/out tiles + resident W,b
    # + in-kernel temporaries (f32 y, ew-dtype gamma/beta/x).
    w_bytes = w.size * w.dtype.itemsize + b.size * b.dtype.itemsize
    io_tile_bytes = tile_m * (2 * F + C) * itemsize
    temp_bytes = tile_m * 2 * F * 4 + 3 * tile_m * F * ew_itemsize
    need = 2 * io_tile_bytes + w_bytes + temp_bytes
    try:
        phys_vmem = pltpu.get_tpu_info().vmem_capacity_bytes
    except Exception:  # pragma: no cover
        phys_vmem = 64 * 1024 * 1024                      # v7x floor
    vmem_limit = int(min(phys_vmem * 3 // 4,
                         max(32 * 1024 * 1024, 2 * need)))

    cost = pl.CostEstimate(
        flops=2 * M * C * (2 * F) + 3 * M * F,
        transcendentals=0,
        bytes_accessed=(2 * M * F * itemsize                       # x in, out
                        + M * C * jnp.dtype(cond.dtype).itemsize   # cond in
                        + w_bytes),                                # weights
    )

    kernel = functools.partial(_film_kernel, F=F, ew_dtype=ew_dtype)
    out = pl.pallas_call(
        kernel,
        out_shape=jax.ShapeDtypeStruct((M, F), x.dtype),
        grid=grid,
        in_specs=[
            pl.BlockSpec((tile_m, F), lambda i: (i, 0)),   # x rows
            pl.BlockSpec((tile_m, C), lambda i: (i, 0)),   # conditioning rows
            pl.BlockSpec(w.shape, lambda i: (0, 0)),       # resident fused weight
            pl.BlockSpec(b.shape, lambda i: (0, 0)),       # resident fused bias
        ],
        out_specs=pl.BlockSpec((tile_m, F), lambda i: (i, 0)),
        compiler_params=pltpu.CompilerParams(
            dimension_semantics=("parallel",),
            vmem_limit_bytes=vmem_limit,
        ),
        cost_estimate=cost,
    )(x2, c2, w, b)

    return out.reshape(*lead, F)


if __name__ == "__main__":
    key = jax.random.PRNGKey(0)
    kx, kc, kwg, kbg, kwb, kbb = jax.random.split(key, 6)

    B, S, F_IN, F_COND = 2, 8, 32, 16
    x = jax.random.normal(kx, (B, S, F_IN), jnp.float32)
    cond = jax.random.normal(kc, (B, S, F_COND), jnp.float32)

    # Linear weights stored as (in, out) so the kernel computes c @ W + b.
    wg = jax.random.normal(kwg, (F_COND, F_IN), jnp.float32) / jnp.sqrt(float(F_COND))
    bg = 0.01 * jax.random.normal(kbg, (F_IN,), jnp.float32)
    wb = jax.random.normal(kwb, (F_COND, F_IN), jnp.float32) / jnp.sqrt(float(F_COND))
    bb = 0.01 * jax.random.normal(kbb, (F_IN,), jnp.float32)

    out = film(x, cond, wg, bg, wb, bb)
    jax.block_until_ready(out)

    # Pure-JAX reference check of the fused kernel.
    gamma_ref = cond @ wg + bg
    beta_ref = cond @ wb + bb
    ref = gamma_ref * x + beta_ref
    assert out.shape == ref.shape and out.dtype == jnp.float32
    assert jnp.allclose(out, ref, atol=1e-5, rtol=1e-5)

    print("KERNEL_OK")
</pallas_src>

<mosaic_0001>
module attributes {stable_mosaic.version = 11 : i64} {
  func.func @_film_kernel(%arg0: i32, %arg1: memref<16x32xf32, #tpu.memory_space<vmem>>, %arg2: memref<16x16xf32, #tpu.memory_space<vmem>>, %arg3: memref<16x64xf32, #tpu.memory_space<vmem>>, %arg4: memref<1x64xf32, #tpu.memory_space<vmem>>, %arg5: memref<16x32xf32, #tpu.memory_space<vmem>>) attributes {dimension_semantics = [#tpu.dimension_semantics<parallel>], iteration_bounds = array<i64: 1>, scalar_prefetch = 0 : i64, scratch_operands = 0 : i64, tpu.core_type = #tpu.core_type<tc>, window_params = [{transform_indices = @transform_0, window_bounds = array<i64: 16, 32>}, {transform_indices = @transform_1, window_bounds = array<i64: 16, 16>}, {pipeline_mode = #tpu.pipeline_mode<synchronous>, transform_indices = @transform_2, window_bounds = array<i64: 16, 64>}, {pipeline_mode = #tpu.pipeline_mode<synchronous>, transform_indices = @transform_3, window_bounds = array<i64: 1, 64>}, {transform_indices = @transform_4, window_bounds = array<i64: 16, 32>}]} {
    %c0 = arith.constant 0 : index
    %c0_0 = arith.constant 0 : index
    %0 = vector.load %arg2[%c0, %c0_0] : memref<16x16xf32, #tpu.memory_space<vmem>>, vector<16x16xf32>
    %c0_1 = arith.constant 0 : index
    %c0_2 = arith.constant 0 : index
    %1 = vector.load %arg3[%c0_1, %c0_2] : memref<16x64xf32, #tpu.memory_space<vmem>>, vector<16x64xf32>
    %cst = arith.constant dense<0.000000e+00> : vector<16x64xf32>
    %2 = tpu.matmul %0, %1, %cst {dimension_numbers = #tpu.dot_dimension_numbers<[1], [0], [0], [1], [0, 0, 1, 1], [], []>} : vector<16x16xf32>, vector<16x64xf32>, vector<16x64xf32> -> vector<16x64xf32>
    %c0_3 = arith.constant 0 : index
    %c0_4 = arith.constant 0 : index
    %3 = vector.load %arg4[%c0_3, %c0_4] : memref<1x64xf32, #tpu.memory_space<vmem>>, vector<1x64xf32>
    %4 = vector.broadcast %3 : vector<1x64xf32> to vector<16x64xf32>
    %5 = arith.addf %2, %4 : vector<16x64xf32>
    %6 = vector.extract_strided_slice %5 {offsets = [0, 0], sizes = [16, 32], strides = [1, 1]} : vector<16x64xf32> to vector<16x32xf32>
    %7 = vector.extract_strided_slice %5 {offsets = [0, 32], sizes = [16, 32], strides = [1, 1]} : vector<16x64xf32> to vector<16x32xf32>
    %c0_5 = arith.constant 0 : index
    %c0_6 = arith.constant 0 : index
    %8 = vector.load %arg1[%c0_5, %c0_6] : memref<16x32xf32, #tpu.memory_space<vmem>>, vector<16x32xf32>
    %9 = arith.mulf %6, %8 : vector<16x32xf32>
    %10 = arith.addf %9, %7 : vector<16x32xf32>
    %c0_7 = arith.constant 0 : index
    %c0_8 = arith.constant 0 : index
    %11 = vector.load %arg5[%c0_7, %c0_8] : memref<16x32xf32, #tpu.memory_space<vmem>>, vector<16x32xf32>
    tpu.vector_store %arg5[%c0_7, %c0_8], %10 {strides = array<i32>} : memref<16x32xf32, #tpu.memory_space<vmem>>, vector<16x32xf32>,
    return
  }
  func.func @transform_0(%arg0: i32) -> (i32, i32) {
    %c0_i32 = arith.constant 0 : i32
    %c0_i32_0 = arith.constant 0 : i32
    return %arg0, %c0_i32 : i32, i32
  }
  func.func @transform_1(%arg0: i32) -> (i32, i32) {
    %c0_i32 = arith.constant 0 : i32
    %c0_i32_0 = arith.constant 0 : i32
    return %arg0, %c0_i32 : i32, i32
  }
  func.func @transform_2(%arg0: i32) -> (i32, i32) {
    %c0_i32 = arith.constant 0 : i32
    %c0_i32_0 = arith.constant 0 : i32
    %c0_i32_1 = arith.constant 0 : i32
    return %c0_i32, %c0_i32_0 : i32, i32
  }
  func.func @transform_3(%arg0: i32) -> (i32, i32) {
    %c0_i32 = arith.constant 0 : i32
    %c0_i32_0 = arith.constant 0 : i32
    %c0_i32_1 = arith.constant 0 : i32
    return %c0_i32, %c0_i32_0 : i32, i32
  }
  func.func @transform_4(%arg0: i32) -> (i32, i32) {
    %c0_i32 = arith.constant 0 : i32
    %c0_i32_0 = arith.constant 0 : i32
    return %arg0, %c0_i32 : i32, i32
  }
}

</mosaic_0001>

<llo_original>
// kernel: tpu_custom_call.1
$region0: #{tpu_custom_call.1}
  #allocation0 [shape = 'u32[]', space=smem, size = 0x4, offset = 0x4, fixed_abs, tag = 'smem constant byte address 0x4 - core index']
  #allocation1 [shape = 'u32[72,128]{1,0:T(1,128)}', space=vmem, size = 0x9000, scoped, tag = 'internal scratch']
  %s0 = inlined_call_operand.hbm [shape: f32[16,32], index: 0, kind: input, shape index: {}]
  %s1 = inlined_call_operand.hbm [shape: f32[16,16], index: 1, kind: input, shape index: {}]
  %s2 = inlined_call_operand.hbm [shape: f32[16,64], index: 2, kind: input, shape index: {}]
  %s3 = inlined_call_operand.vmem [shape: f32[1,64], index: 3, kind: input, shape index: {}]
  %s4 = inlined_call_operand.hbm [shape: f32[16,32], index: 4, kind: output, shape index: {}]
  %s5 = sld [smem:[#allocation0]]
  $region38: #{tpu_custom_call.1} parent=0
    _
  %s7 = ssub.s32 1, %s5
  %s8 = scalar_select 0, %s7, %s5
  $region1: #{tpu_custom_call.1} parent=0
    #allocation2 [shape = 'u8[8192]{0}', space=vmem, size = 0x2000, scoped, tag = 'input window, operand 0, single buffered']
    #allocation3 [shape = 's32[1]{0}', space=sflag, size = 0x4, scoped, tag = 'scoped memory for tpu_custom_call.1']
    #allocation4 [shape = 's32[1]{0}', space=sflag, size = 0x4, scoped, tag = 'scoped memory for tpu_custom_call.1']
    #allocation5 [shape = 'u8[8192]{0}', space=vmem, size = 0x2000, scoped, tag = 'input window, operand 1, single buffered']
    #allocation6 [shape = 's32[1]{0}', space=sflag, size = 0x4, scoped, tag = 'scoped memory for tpu_custom_call.1']
    #allocation7 [shape = 'u8[8192]{0}', space=vmem, size = 0x2000, scoped, tag = 'input window, operand 2, single buffered']
    #allocation8 [shape = 'u8[8192]{0}', space=vmem, size = 0x2000, scoped, tag = 'output window, operand 0, single buffered']
    %9 = vsyncpa [#allocation3], 0
    %10 = vsyncpa [#allocation6], 0
    %11 = vsyncpa [#allocation4], 0
    // Predicated region
    $region2: #{tpu_custom_call.1} parent=1 // pred_check
      _
    $region3: #{tpu_custom_call.1} parent=1 // pred_check_branch
      %13 = sbr.rel (0) target = $region5
    $region4: #{tpu_custom_call.1} parent=1 // pred_region
      %15 = vsyncadd [#allocation3], 0
      %s16 = sshll.u32 %s0, 4
      %s17 = int_to_ptr.hbm [resolvable:$true] %s16
      %s18 = sshll.u32 [#allocation2], 4
      %s19 = int_to_ptr.vmem [resolvable:$true] %s18
      %24 = dma.hbm_to_vmem [thread:$0]  %s17, 256, %s19, [#allocation3], 128, 128, 8
    $region5: #{tpu_custom_call.1} parent=1 // pred_fallthru
      _
    // Predicated region
    $region6: #{tpu_custom_call.1} parent=1 // pred_check
      _
    $region7: #{tpu_custom_call.1} parent=1 // pred_check_branch
      %26 = sbr.rel (0) target = $region9
    $region8: #{tpu_custom_call.1} parent=1 // pred_region
      %28 = vsyncadd [#allocation6], 0
      %s29 = sshll.u32 %s1, 4
      %s30 = int_to_ptr.hbm [resolvable:$true] %s29
      %s31 = sshll.u32 [#allocation5], 4
      %s32 = int_to_ptr.vmem [resolvable:$true] %s31
      %37 = dma.hbm_to_vmem [thread:$0]  %s30, 256, %s32, [#allocation6], 128, 128, 8
    $region9: #{tpu_custom_call.1} parent=1 // pred_fallthru
      _
    // Predicated region
    $region10: #{tpu_custom_call.1} parent=1 // pred_check
      _
    $region11: #{tpu_custom_call.1} parent=1 // pred_check_branch
      %39 = sbr.rel (0) target = $region13
    $region12: #{tpu_custom_call.1} parent=1 // pred_region
      %41 = vsyncadd [#allocation6], 0
      %s42 = sshll.u32 %s2, 4
      %s43 = int_to_ptr.hbm [resolvable:$true] %s42
      %s44 = sshll.u32 [#allocation7], 4
      %s45 = int_to_ptr.vmem [resolvable:$true] %s44
      %50 = dma.hbm_to_vmem [thread:$0]  %s43, 256, %s45, [#allocation6], 128, 128, 8
    $region13: #{tpu_custom_call.1} parent=1 // pred_fallthru
      _
    // Predicated region
    $region14: #{tpu_custom_call.1} parent=1 // pred_check
      _
    $region15: #{tpu_custom_call.1} parent=1 // pred_check_branch
      %52 = sbr.rel (0) target = $region17
    $region16: #{tpu_custom_call.1} parent=1 // pred_region
      _
    $region17: #{tpu_custom_call.1} parent=1 // pred_fallthru
      _
    // Predicated region
    $region18: #{tpu_custom_call.1} parent=1 // pred_check
      _
    $region19: #{tpu_custom_call.1} parent=1 // pred_check_branch
      %54 = sbr.rel (0) target = $region21
    $region20: #{tpu_custom_call.1} parent=1 // pred_region
      %56 = dma.done [#allocation3], 256
    $region21: #{tpu_custom_call.1} parent=1 // pred_fallthru
      _
    // Predicated region
    $region22: #{tpu_custom_call.1} parent=1 // pred_check
      _
    $region23: #{tpu_custom_call.1} parent=1 // pred_check_branch
      %58 = sbr.rel (0) target = $region25
    $region24: #{tpu_custom_call.1} parent=1 // pred_region
      %60 = dma.done [#allocation6], 256
    $region25: #{tpu_custom_call.1} parent=1 // pred_fallthru
      _
    // Predicated region
    $region26: #{tpu_custom_call.1} parent=1 // pred_check
      _
    $region27: #{tpu_custom_call.1} parent=1 // pred_check_branch
      %62 = sbr.rel (0) target = $region29
    $region28: #{tpu_custom_call.1} parent=1 // pred_region
      %64 = dma.done [#allocation6], 256
    $region29: #{tpu_custom_call.1} parent=1 // pred_fallthru
      _
    %v65 = vld [vmem:[#allocation5] sm:$0xff]
    %v66 = vld [vmem:[#allocation5 + $0x8] sm:$0xff]
    %v67 = vld [vmem:[#allocation7] sm:$0xff]
    %v68 = vld [vmem:[#allocation7 + $0x8] sm:$0xff]
    %v69 = vld [vmem:[%s3] sm:$0x1]
    %v71 = vperm.slane %v69, 0
    %vm73 = vcmask 130048
    %v75 = vsel %vm73, %v65, 0
    %v78 = vsel %vm73, %v66, 0
    %80 = vmatpush.msra.mxu0 0.0
    %81 = vmatpush.msra.mxu0 0.0
    %82 = vmatpush.msra.mxu0 0.0
    %83 = vmatpush.msra.mxu0 0.0
    %84 = vmatpush.msra.mxu0 0.0
    %85 = vmatpush.msra.mxu0 0.0
    %86 = vmatpush.msra.mxu0 0.0
    %87 = vmatpush.msra.mxu0 0.0
    %88 = vmatpush.msra.mxu0 0.0
    %89 = vmatpush.msra.mxu0 0.0
    %90 = vmatpush.msra.mxu0 0.0
    %91 = vmatpush.msra.mxu0 0.0
    %92 = vmatpush.msra.mxu0 0.0
    %93 = vmatpush.msra.mxu0 0.0
    %94 = vmatpush.msra.mxu0 %v68
    %95 = vmatpush.msra.mxu0 %v67
    %96 = vmatmul.f32.gmra.mxu0 %v75
    %v97 = vpop.f32.mrf.mxu0
    %v98 = vadd.f32 %v71, %v97
    %99 = vmatmul.f32.gmra.mxu0 %v78
    %v100 = vpop.f32.mrf.mxu0
    %v101 = vadd.f32 %v71, %v100
    %102 = vdwg.mxu0
    %v103 = vld [vmem:[#allocation2] sm:$0xff]
    %v104 = vld [vmem:[#allocation2 + $0x8] sm:$0xff]
    %v105 = vmul.f32 %v98, %v103
    %v106 = vmul.f32 %v101, %v104
    %109 = vrot.lane.b32.xlu0 %v98, 96
    %v110 = vpop.permute.xlu0 %109
    %111 = vrot.lane.b32.xlu0 %v101, 96
    %v112 = vpop.permute.xlu0 %111
    %v115 = vadd.f32 %v105, %v110
    %v116 = vadd.f32 %v106, %v112
    %vm117 = vcmask 261120
    %118 = vst.msk [vmem:[#allocation8] sm:$0xff] %vm117, %v115
    %119 = vst.msk [vmem:[#allocation8 + $0x8] sm:$0xff] %vm117, %v116
    // Predicated region
    $region30: #{tpu_custom_call.1} parent=1 // pred_check
      _
    $region31: #{tpu_custom_call.1} parent=1 // pred_check_branch
      %121 = sbr.rel (0) target = $region33
    $region32: #{tpu_custom_call.1} parent=1 // pred_region
      %123 = vsyncadd [#allocation4], 0
      %s124 = sshll.u32 [#allocation8], 4
      %s125 = int_to_ptr.vmem [resolvable:$true] %s124
      %s126 = sshll.u32 %s4, 4
      %s127 = int_to_ptr.hbm [resolvable:$true] %s126
      %132 = dma.vmem_to_hbm [thread:$0]  %s125, 256, %s127, [#allocation4], 128, 128, 8
    $region33: #{tpu_custom_call.1} parent=1 // pred_fallthru
      _
    // Predicated region
    $region34: #{tpu_custom_call.1} parent=1 // pred_check
      _
    $region35: #{tpu_custom_call.1} parent=1 // pred_check_branch
      %134 = sbr.rel (0) target = $region37
    $region36: #{tpu_custom_call.1} parent=1 // pred_region
      %136 = dma.done [#allocation4], 256
    $region37: #{tpu_custom_call.1} parent=1 // pred_fallthru
      _
    %137 = vsyncpa [#allocation3], 1
    %138 = vsyncpa [#allocation6], 1
    %139 = vsyncpa [#allocation4], 1

</llo_original>
